<compile_context>
chip_gen: v7x
topology: tpu7x:2x2x1
jax: 0.10.0
libtpu: 0.0.40
codegen_flags: <defaults>
</compile_context>

<pallas_src>
import jax
import jax.numpy as jnp
import numpy as np
from jax.experimental import pallas as pl
from jax.experimental.pallas import tpu as pltpu

# Static, sorted list of (odd) moving-average kernel sizes.
KERNEL_SIZES = (3, 5)
assert all(k % 2 == 1 for k in KERNEL_SIZES), (
    "even kernel sizes change AvgPool1d's output length; only odd sizes are "
    "supported by this kernel")


def _decomp_kernel(x_ref, sea_ref, mean_ref):
    """Block shapes: (TB, L, TC).  The sliding window runs along L (sublanes)."""
    tb, seq_len, tc = x_ref.shape
    ks = sorted(KERNEL_SIZES)
    inv_nk = 1.0 / len(ks)

    # TB is small (<= 8): static unroll, each slice is a 2-D (L, TC) tile.
    for b in range(tb):
        x = x_ref[b].astype(jnp.float32)                         # (L, TC)
        row = jax.lax.broadcasted_iota(jnp.int32, (seq_len, tc), 0)
        first = jnp.broadcast_to(x[0:1, :], (seq_len, tc))       # row 0 bcast
        last = jnp.broadcast_to(x[seq_len - 1:seq_len, :], (seq_len, tc))

        def clamped_shift(s):
            # y[t] = x[clamp(t + s, 0, L-1)]: circular XLU roll + edge select.
            if s == 0:
                return x
            r = pltpu.roll(x, (-s) % seq_len, 0)
            if s > 0:
                return jnp.where(row >= seq_len - s, last, r)
            return jnp.where(row < -s, first, r)

        # Window sums shared across kernel sizes: widen the previous sum.
        win = x                       # width-1 window sum
        prev_p = 0
        mean_acc = jnp.zeros((seq_len, tc), jnp.float32)
        for k in ks:
            p = (k - 1) // 2
            for s in range(prev_p + 1, p + 1):
                win = win + clamped_shift(s) + clamped_shift(-s)
            prev_p = p
            mean_acc = mean_acc + win * (1.0 / k)

        moving_mean = mean_acc * inv_nk
        sea = x - moving_mean
        mean_ref[b] = moving_mean.astype(mean_ref.dtype)
        sea_ref[b] = sea.astype(sea_ref.dtype)


def _pick_lane_tile(seq_len, n_ch, target_bytes=1 << 20):
    """Channel (lane) tile: multiple of 128 when possible, ~<= 1 MiB (f32)."""
    if n_ch <= 128:
        return n_ch                              # full extent required/needed
    max_tc = (target_bytes // (seq_len * 4)) // 128 * 128
    max_tc = max(128, min(max_tc, (n_ch // 128) * 128))
    # Prefer an exact divisor of n_ch (avoids padded partial lane blocks).
    for cand in range(max_tc, 127, -128):
        if n_ch % cand == 0:
            return cand
    return max_tc


def _pick_batch_tile(batch, seq_len, tc, target_bytes=1 << 20):
    """Merge batch rows into a block only when the per-row tile is tiny."""
    tile = seq_len * tc * 4
    if batch == 1 or tile >= 512 * 1024:
        return 1
    want = min(batch, 8, max(1, target_bytes // tile))
    for tb in range(want, 0, -1):                # largest divisor of batch
        if batch % tb == 0:
            return tb
    return 1


def series_decomp_multi(x):
    """x: (B, L, C) -> (sea, moving_mean), both (B, L, C)."""
    B, L, C = x.shape
    tc = _pick_lane_tile(L, C)
    tb = _pick_batch_tile(B, L, tc)
    grid = (pl.cdiv(B, tb), pl.cdiv(C, tc))
    spec = pl.BlockSpec((tb, L, tc), lambda b, c: (b, 0, c))

    out_shape = (
        jax.ShapeDtypeStruct((B, L, C), x.dtype),  # sea
        jax.ShapeDtypeStruct((B, L, C), x.dtype),  # moving_mean
    )
    itemsize = jnp.dtype(x.dtype).itemsize
    cost = pl.CostEstimate(
        flops=10 * B * L * C,
        transcendentals=0,
        bytes_accessed=3 * B * L * C * itemsize,   # 1 read + 2 writes
    )
    return pl.pallas_call(
        _decomp_kernel,
        out_shape=out_shape,
        grid=grid,
        in_specs=[spec],
        out_specs=(spec, spec),
        compiler_params=pltpu.CompilerParams(
            dimension_semantics=("parallel", "parallel")),
        cost_estimate=cost,
    )(x)


def _reference(x):
    """Pure-numpy reference reproducing the PyTorch semantics."""
    x = np.asarray(x, dtype=np.float32)
    B, L, C = x.shape
    means = []
    for k in KERNEL_SIZES:
        p = (k - 1) // 2
        front = np.repeat(x[:, 0:1, :], p, axis=1)
        end = np.repeat(x[:, -1:, :], p, axis=1)
        xp = np.concatenate([front, x, end], axis=1)  # (B, L+2p, C)
        avg = np.stack([xp[:, j:j + L, :] for j in range(k)], axis=0).mean(0)
        means.append(avg)
    moving_mean = sum(means) / len(means)
    sea = sum(x - m for m in means) / len(means)
    return sea, moving_mean


if __name__ == "__main__":
    key = jax.random.PRNGKey(0)
    B, L, C = 2, 8, 32
    x = jax.random.normal(key, (B, L, C), dtype=jnp.float32)

    sea, moving_mean = series_decomp_multi(x)
    jax.block_until_ready((sea, moving_mean))

    sea_ref, mean_ref = _reference(x)
    np.testing.assert_allclose(np.asarray(sea), sea_ref, rtol=1e-5, atol=1e-5)
    np.testing.assert_allclose(np.asarray(moving_mean), mean_ref, rtol=1e-5, atol=1e-5)

    print("KERNEL_OK")
</pallas_src>

<mosaic_0001>
module attributes {stable_mosaic.version = 11 : i64} {
  func.func @_decomp_kernel(%arg0: i32, %arg1: i32, %arg2: memref<2x8x32xf32, #tpu.memory_space<vmem>>, %arg3: memref<2x8x32xf32, #tpu.memory_space<vmem>>, %arg4: memref<2x8x32xf32, #tpu.memory_space<vmem>>) attributes {dimension_semantics = [#tpu.dimension_semantics<parallel>, #tpu.dimension_semantics<parallel>], iteration_bounds = array<i64: 1, 1>, scalar_prefetch = 0 : i64, scratch_operands = 0 : i64, tpu.core_type = #tpu.core_type<tc>, window_params = [{transform_indices = @transform_0, window_bounds = array<i64: 2, 8, 32>}, {transform_indices = @transform_1, window_bounds = array<i64: 2, 8, 32>}, {transform_indices = @transform_2, window_bounds = array<i64: 2, 8, 32>}]} {
    %c0 = arith.constant 0 : index
    %c0_0 = arith.constant 0 : index
    %c0_1 = arith.constant 0 : index
    %0 = vector.load %arg2[%c0, %c0_0, %c0_1] : memref<2x8x32xf32, #tpu.memory_space<vmem>>, vector<1x8x32xf32>
    %1 = vector.shape_cast %0 : vector<1x8x32xf32> to vector<8x32xf32>
    %2 = tpu.iota {dimensions = array<i32: 0>} : vector<8x32xi32>
    %3 = vector.extract_strided_slice %1 {offsets = [0, 0], sizes = [1, 32], strides = [1, 1]} : vector<8x32xf32> to vector<1x32xf32>
    %4 = vector.shape_cast %3 : vector<1x32xf32> to vector<1x32xf32>
    %5 = vector.broadcast %4 : vector<1x32xf32> to vector<8x32xf32>
    %6 = vector.extract_strided_slice %1 {offsets = [7, 0], sizes = [1, 32], strides = [1, 1]} : vector<8x32xf32> to vector<1x32xf32>
    %7 = vector.shape_cast %6 : vector<1x32xf32> to vector<1x32xf32>
    %8 = vector.broadcast %7 : vector<1x32xf32> to vector<8x32xf32>
    %cst = arith.constant 0.000000e+00 : f32
    %9 = vector.broadcast %cst : f32 to vector<8x32xf32>
    %c7_i32 = arith.constant 7 : i32
    %10 = tpu.dynamic_rotate %1 by %c7_i32 dim 0 : vector<8x32xf32>, i32 -> vector<8x32xf32>
    %c7_i32_2 = arith.constant 7 : i32
    %11 = vector.broadcast %c7_i32_2 : i32 to vector<8x32xi32>
    %12 = arith.cmpi sge, %2, %11 : vector<8x32xi32>
    %13 = arith.select %12, %8, %10 : vector<8x32xi1>, vector<8x32xf32>
    %14 = arith.addf %1, %13 : vector<8x32xf32>
    %c1_i32 = arith.constant 1 : i32
    %15 = tpu.dynamic_rotate %1 by %c1_i32 dim 0 : vector<8x32xf32>, i32 -> vector<8x32xf32>
    %c1_i32_3 = arith.constant 1 : i32
    %16 = vector.broadcast %c1_i32_3 : i32 to vector<8x32xi32>
    %17 = arith.cmpi slt, %2, %16 : vector<8x32xi32>
    %18 = arith.select %17, %5, %15 : vector<8x32xi1>, vector<8x32xf32>
    %19 = arith.addf %14, %18 : vector<8x32xf32>
    %cst_4 = arith.constant 0.333333343 : f32
    %20 = vector.broadcast %cst_4 : f32 to vector<8x32xf32>
    %21 = arith.mulf %19, %20 : vector<8x32xf32>
    %22 = arith.addf %9, %21 : vector<8x32xf32>
    %c6_i32 = arith.constant 6 : i32
    %23 = tpu.dynamic_rotate %1 by %c6_i32 dim 0 : vector<8x32xf32>, i32 -> vector<8x32xf32>
    %c6_i32_5 = arith.constant 6 : i32
    %24 = vector.broadcast %c6_i32_5 : i32 to vector<8x32xi32>
    %25 = arith.cmpi sge, %2, %24 : vector<8x32xi32>
    %26 = arith.select %25, %8, %23 : vector<8x32xi1>, vector<8x32xf32>
    %27 = arith.addf %19, %26 : vector<8x32xf32>
    %c2_i32 = arith.constant 2 : i32
    %28 = tpu.dynamic_rotate %1 by %c2_i32 dim 0 : vector<8x32xf32>, i32 -> vector<8x32xf32>
    %c2_i32_6 = arith.constant 2 : i32
    %29 = vector.broadcast %c2_i32_6 : i32 to vector<8x32xi32>
    %30 = arith.cmpi slt, %2, %29 : vector<8x32xi32>
    %31 = arith.select %30, %5, %28 : vector<8x32xi1>, vector<8x32xf32>
    %32 = arith.addf %27, %31 : vector<8x32xf32>
    %cst_7 = arith.constant 2.000000e-01 : f32
    %33 = vector.broadcast %cst_7 : f32 to vector<8x32xf32>
    %34 = arith.mulf %32, %33 : vector<8x32xf32>
    %35 = arith.addf %22, %34 : vector<8x32xf32>
    %cst_8 = arith.constant 5.000000e-01 : f32
    %36 = vector.broadcast %cst_8 : f32 to vector<8x32xf32>
    %37 = arith.mulf %35, %36 : vector<8x32xf32>
    %38 = arith.subf %1, %37 : vector<8x32xf32>
    %c0_9 = arith.constant 0 : index
    %c0_10 = arith.constant 0 : index
    %c0_11 = arith.constant 0 : index
    %39 = vector.load %arg4[%c0_9, %c0_10, %c0_11] : memref<2x8x32xf32, #tpu.memory_space<vmem>>, vector<1x8x32xf32>
    %40 = vector.shape_cast %39 : vector<1x8x32xf32> to vector<8x32xf32>
    %41 = vector.shape_cast %37 : vector<8x32xf32> to vector<1x8x32xf32>
    tpu.vector_store %arg4[%c0_9, %c0_10, %c0_11], %41 {strides = array<i32>} : memref<2x8x32xf32, #tpu.memory_space<vmem>>, vector<1x8x32xf32>,
    %c0_12 = arith.constant 0 : index
    %c0_13 = arith.constant 0 : index
    %c0_14 = arith.constant 0 : index
    %42 = vector.load %arg3[%c0_12, %c0_13, %c0_14] : memref<2x8x32xf32, #tpu.memory_space<vmem>>, vector<1x8x32xf32>
    %43 = vector.shape_cast %42 : vector<1x8x32xf32> to vector<8x32xf32>
    %44 = vector.shape_cast %38 : vector<8x32xf32> to vector<1x8x32xf32>
    tpu.vector_store %arg3[%c0_12, %c0_13, %c0_14], %44 {strides = array<i32>} : memref<2x8x32xf32, #tpu.memory_space<vmem>>, vector<1x8x32xf32>,
    %c1 = arith.constant 1 : index
    %c0_15 = arith.constant 0 : index
    %c0_16 = arith.constant 0 : index
    %45 = vector.load %arg2[%c1, %c0_15, %c0_16] : memref<2x8x32xf32, #tpu.memory_space<vmem>>, vector<1x8x32xf32>
    %46 = vector.shape_cast %45 : vector<1x8x32xf32> to vector<8x32xf32>
    %47 = tpu.iota {dimensions = array<i32: 0>} : vector<8x32xi32>
    %48 = vector.extract_strided_slice %46 {offsets = [0, 0], sizes = [1, 32], strides = [1, 1]} : vector<8x32xf32> to vector<1x32xf32>
    %49 = vector.shape_cast %48 : vector<1x32xf32> to vector<1x32xf32>
    %50 = vector.broadcast %49 : vector<1x32xf32> to vector<8x32xf32>
    %51 = vector.extract_strided_slice %46 {offsets = [7, 0], sizes = [1, 32], strides = [1, 1]} : vector<8x32xf32> to vector<1x32xf32>
    %52 = vector.shape_cast %51 : vector<1x32xf32> to vector<1x32xf32>
    %53 = vector.broadcast %52 : vector<1x32xf32> to vector<8x32xf32>
    %cst_17 = arith.constant 0.000000e+00 : f32
    %54 = vector.broadcast %cst_17 : f32 to vector<8x32xf32>
    %c7_i32_18 = arith.constant 7 : i32
    %55 = tpu.dynamic_rotate %46 by %c7_i32_18 dim 0 : vector<8x32xf32>, i32 -> vector<8x32xf32>
    %c7_i32_19 = arith.constant 7 : i32
    %56 = vector.broadcast %c7_i32_19 : i32 to vector<8x32xi32>
    %57 = arith.cmpi sge, %47, %56 : vector<8x32xi32>
    %58 = arith.select %57, %53, %55 : vector<8x32xi1>, vector<8x32xf32>
    %59 = arith.addf %46, %58 : vector<8x32xf32>
    %c1_i32_20 = arith.constant 1 : i32
    %60 = tpu.dynamic_rotate %46 by %c1_i32_20 dim 0 : vector<8x32xf32>, i32 -> vector<8x32xf32>
    %c1_i32_21 = arith.constant 1 : i32
    %61 = vector.broadcast %c1_i32_21 : i32 to vector<8x32xi32>
    %62 = arith.cmpi slt, %47, %61 : vector<8x32xi32>
    %63 = arith.select %62, %50, %60 : vector<8x32xi1>, vector<8x32xf32>
    %64 = arith.addf %59, %63 : vector<8x32xf32>
    %cst_22 = arith.constant 0.333333343 : f32
    %65 = vector.broadcast %cst_22 : f32 to vector<8x32xf32>
    %66 = arith.mulf %64, %65 : vector<8x32xf32>
    %67 = arith.addf %54, %66 : vector<8x32xf32>
    %c6_i32_23 = arith.constant 6 : i32
    %68 = tpu.dynamic_rotate %46 by %c6_i32_23 dim 0 : vector<8x32xf32>, i32 -> vector<8x32xf32>
    %c6_i32_24 = arith.constant 6 : i32
    %69 = vector.broadcast %c6_i32_24 : i32 to vector<8x32xi32>
    %70 = arith.cmpi sge, %47, %69 : vector<8x32xi32>
    %71 = arith.select %70, %53, %68 : vector<8x32xi1>, vector<8x32xf32>
    %72 = arith.addf %64, %71 : vector<8x32xf32>
    %c2_i32_25 = arith.constant 2 : i32
    %73 = tpu.dynamic_rotate %46 by %c2_i32_25 dim 0 : vector<8x32xf32>, i32 -> vector<8x32xf32>
    %c2_i32_26 = arith.constant 2 : i32
    %74 = vector.broadcast %c2_i32_26 : i32 to vector<8x32xi32>
    %75 = arith.cmpi slt, %47, %74 : vector<8x32xi32>
    %76 = arith.select %75, %50, %73 : vector<8x32xi1>, vector<8x32xf32>
    %77 = arith.addf %72, %76 : vector<8x32xf32>
    %cst_27 = arith.constant 2.000000e-01 : f32
    %78 = vector.broadcast %cst_27 : f32 to vector<8x32xf32>
    %79 = arith.mulf %77, %78 : vector<8x32xf32>
    %80 = arith.addf %67, %79 : vector<8x32xf32>
    %cst_28 = arith.constant 5.000000e-01 : f32
    %81 = vector.broadcast %cst_28 : f32 to vector<8x32xf32>
    %82 = arith.mulf %80, %81 : vector<8x32xf32>
    %83 = arith.subf %46, %82 : vector<8x32xf32>
    %c1_29 = arith.constant 1 : index
    %c0_30 = arith.constant 0 : index
    %c0_31 = arith.constant 0 : index
    %84 = vector.load %arg4[%c1_29, %c0_30, %c0_31] : memref<2x8x32xf32, #tpu.memory_space<vmem>>, vector<1x8x32xf32>
    %85 = vector.shape_cast %84 : vector<1x8x32xf32> to vector<8x32xf32>
    %86 = vector.shape_cast %82 : vector<8x32xf32> to vector<1x8x32xf32>
    tpu.vector_store %arg4[%c1_29, %c0_30, %c0_31], %86 {strides = array<i32>} : memref<2x8x32xf32, #tpu.memory_space<vmem>>, vector<1x8x32xf32>,
    %c1_32 = arith.constant 1 : index
    %c0_33 = arith.constant 0 : index
    %c0_34 = arith.constant 0 : index
    %87 = vector.load %arg3[%c1_32, %c0_33, %c0_34] : memref<2x8x32xf32, #tpu.memory_space<vmem>>, vector<1x8x32xf32>
    %88 = vector.shape_cast %87 : vector<1x8x32xf32> to vector<8x32xf32>
    %89 = vector.shape_cast %83 : vector<8x32xf32> to vector<1x8x32xf32>
    tpu.vector_store %arg3[%c1_32, %c0_33, %c0_34], %89 {strides = array<i32>} : memref<2x8x32xf32, #tpu.memory_space<vmem>>, vector<1x8x32xf32>,
    return
  }
  func.func @transform_0(%arg0: i32, %arg1: i32) -> (i32, i32, i32) {
    %c0_i32 = arith.constant 0 : i32
    %c0_i32_0 = arith.constant 0 : i32
    return %arg0, %c0_i32, %arg1 : i32, i32, i32
  }
  func.func @transform_1(%arg0: i32, %arg1: i32) -> (i32, i32, i32) {
    %c0_i32 = arith.constant 0 : i32
    %c0_i32_0 = arith.constant 0 : i32
    return %arg0, %c0_i32, %arg1 : i32, i32, i32
  }
  func.func @transform_2(%arg0: i32, %arg1: i32) -> (i32, i32, i32) {
    %c0_i32 = arith.constant 0 : i32
    %c0_i32_0 = arith.constant 0 : i32
    return %arg0, %c0_i32, %arg1 : i32, i32, i32
  }
}

</mosaic_0001>

<llo_original>
// kernel: tpu_custom_call.1
$region0: #{tpu_custom_call.1}
  #allocation0 [shape = 'u32[]', space=smem, size = 0x4, offset = 0x4, fixed_abs, tag = 'smem constant byte address 0x4 - core index']
  #allocation1 [shape = 'u32[144,128]{1,0:T(1,128)}', space=vmem, size = 0x12000, scoped, tag = 'internal scratch']
  %s0 = inlined_call_operand.hbm [shape: f32[2,8,32], index: 0, kind: input, shape index: {}]
  %s1 = inlined_call_operand.hbm [shape: f32[2,8,32], index: 1, kind: output, shape index: {0}]
  %s2 = inlined_call_operand.hbm [shape: f32[2,8,32], index: 2, kind: output, shape index: {1}]
  %3 = xla_tuple %s1, %s2
  %s4 = sld [smem:[#allocation0]]
  $region26: #{tpu_custom_call.1} parent=0
    _
  %s6 = ssub.s32 1, %s4
  %s7 = scalar_select 0, %s6, %s4
  $region1: #{tpu_custom_call.1} parent=0
    #allocation2 [shape = 'u8[8192]{0}', space=vmem, size = 0x2000, scoped, tag = 'input window, operand 0, single buffered']
    #allocation3 [shape = 's32[1]{0}', space=sflag, size = 0x4, scoped, tag = 'scoped memory for tpu_custom_call.1']
    #allocation4 [shape = 's32[1]{0}', space=sflag, size = 0x4, scoped, tag = 'scoped memory for tpu_custom_call.1']
    #allocation5 [shape = 'u8[8192]{0}', space=vmem, size = 0x2000, scoped, tag = 'output window, operand 0, single buffered']
    #allocation6 [shape = 'u8[8192]{0}', space=vmem, size = 0x2000, scoped, tag = 'output window, operand 1, single buffered']
    #allocation7 [shape = 's32[1]{0}', space=sflag, size = 0x4, scoped, tag = 'scoped memory for tpu_custom_call.1']
    %8 = vsyncpa [#allocation3], 0
    %9 = vsyncpa [#allocation4], 0
    %10 = vsyncpa [#allocation7], 0
    // Predicated region
    $region2: #{tpu_custom_call.1} parent=1 // pred_check
      _
    $region3: #{tpu_custom_call.1} parent=1 // pred_check_branch
      %12 = sbr.rel (0) target = $region5
    $region4: #{tpu_custom_call.1} parent=1 // pred_region
      %s14 = ssub.s32 256, 256
      %15 = vsyncadd [#allocation3], %s14
      %s16 = sshll.u32 [#allocation2], 4
      %s17 = int_to_ptr.vmem [resolvable:$true] %s16
      %22 = dma.hbm_to_vmem [thread:$0]  %s0, 256, %s17, [#allocation3], 128, 128, 8
    $region5: #{tpu_custom_call.1} parent=1 // pred_fallthru
      _
    // Predicated region
    $region6: #{tpu_custom_call.1} parent=1 // pred_check
      _
    $region7: #{tpu_custom_call.1} parent=1 // pred_check_branch
      %24 = sbr.rel (0) target = $region9
    $region8: #{tpu_custom_call.1} parent=1 // pred_region
      %25 = dma.done [#allocation3], 256
    $region9: #{tpu_custom_call.1} parent=1 // pred_fallthru
      _
    %v26 = vld [vmem:[#allocation2] sm:$0xff]
    %v27 = vlaneseq
    %v28 = vshrl.u32 %v27, 7
    %v29 = vlaneseq
    %v30 = vshrl.u32 %v29, 7
    %v31 = vsub.s32 0, %v30
    %v32 = vrot.slane %v26, %v31
    %v33 = vlaneseq
    %v34 = vshrl.u32 %v33, 7
    %v35 = vsub.s32 7, %v34
    %v36 = vrot.slane %v26, %v35
    %v37 = vrot.slane %v26, 1
    %vm38 = vcmp.ge.s32.totalorder %v28, 7
    %v39 = vsel %vm38, %v36, %v37
    %v40 = vadd.f32 %v26, %v39
    %v41 = vrot.slane %v26, 7
    %vm42 = vcmp.lt.s32.totalorder %v28, 1
    %v43 = vsel %vm42, %v32, %v41
    %v44 = vadd.f32 %v40, %v43
    %v45 = vmul.f32 %v44, 0.33333334
    %v46 = vadd.f32 %v45, 0.0
    %v47 = vrot.slane %v26, 2
    %vm48 = vcmp.ge.s32.totalorder %v28, 6
    %v49 = vsel %vm48, %v36, %v47
    %v50 = vadd.f32 %v44, %v49
    %v51 = vrot.slane %v26, 6
    %vm52 = vcmp.lt.s32.totalorder %v28, 2
    %v53 = vsel %vm52, %v32, %v51
    %v54 = vadd.f32 %v50, %v53
    %v55 = vmul.f32 %v54, 0.2
    %v56 = vadd.f32 %v46, %v55
    %v57 = vmul.f32 %v56, 0.5
    %v58 = vsub.f32 %v26, %v57
    %vm59 = vcmask 261120
    %60 = vst.msk [vmem:[#allocation6] sm:$0xff] %vm59, %v57
    %61 = vst.msk [vmem:[#allocation5] sm:$0xff] %vm59, %v58
    %s62 = scalar_lea.vmem [#allocation2], 8
    %v63 = vld [vmem:[%s62] sm:$0xff]
    %v64 = vlaneseq
    %v65 = vshrl.u32 %v64, 7
    %v66 = vsub.s32 0, %v65
    %v67 = vrot.slane %v63, %v66
    %v68 = vlaneseq
    %v69 = vshrl.u32 %v68, 7
    %v70 = vsub.s32 7, %v69
    %v71 = vrot.slane %v63, %v70
    %v72 = vrot.slane %v63, 1
    %v73 = vsel %vm38, %v71, %v72
    %v74 = vadd.f32 %v63, %v73
    %v75 = vrot.slane %v63, 7
    %v76 = vsel %vm42, %v67, %v75
    %v77 = vadd.f32 %v74, %v76
    %v78 = vmul.f32 %v77, 0.33333334
    %v79 = vadd.f32 %v78, 0.0
    %v80 = vrot.slane %v63, 2
    %v81 = vsel %vm48, %v71, %v80
    %v82 = vadd.f32 %v77, %v81
    %v83 = vrot.slane %v63, 6
    %v84 = vsel %vm52, %v67, %v83
    %v85 = vadd.f32 %v82, %v84
    %v86 = vmul.f32 %v85, 0.2
    %v87 = vadd.f32 %v79, %v86
    %v88 = vmul.f32 %v87, 0.5
    %v89 = vsub.f32 %v63, %v88
    %s90 = scalar_lea.vmem [#allocation6], 8
    %91 = vst.msk [vmem:[%s90] sm:$0xff] %vm59, %v88
    %s92 = scalar_lea.vmem [#allocation5], 8
    %93 = vst.msk [vmem:[%s92] sm:$0xff] %vm59, %v89
    // Predicated region
    $region10: #{tpu_custom_call.1} parent=1 // pred_check
      _
    $region11: #{tpu_custom_call.1} parent=1 // pred_check_branch
      %95 = sbr.rel (0) target = $region13
    $region12: #{tpu_custom_call.1} parent=1 // pred_region
      %s97 = ssub.s32 256, 256
      %98 = vsyncadd [#allocation4], %s97
      %s99 = sshll.u32 [#allocation5], 4
      %s100 = int_to_ptr.vmem [resolvable:$true] %s99
      %105 = dma.vmem_to_hbm [thread:$0]  %s100, 256, %s1, [#allocation4], 128, 128, 8
    $region13: #{tpu_custom_call.1} parent=1 // pred_fallthru
      _
    // Predicated region
    $region14: #{tpu_custom_call.1} parent=1 // pred_check
      _
    $region15: #{tpu_custom_call.1} parent=1 // pred_check_branch
      %107 = sbr.rel (0) target = $region17
    $region16: #{tpu_custom_call.1} parent=1 // pred_region
      %s109 = ssub.s32 256, 256
      %110 = vsyncadd [#allocation7], %s109
      %s111 = sshll.u32 [#allocation6], 4
      %s112 = int_to_ptr.vmem [resolvable:$true] %s111
      %117 = dma.vmem_to_hbm [thread:$0]  %s112, 256, %s2, [#allocation7], 128, 128, 8
    $region17: #{tpu_custom_call.1} parent=1 // pred_fallthru
      _
    // Predicated region
    $region18: #{tpu_custom_call.1} parent=1 // pred_check
      _
    $region19: #{tpu_custom_call.1} parent=1 // pred_check_branch
      %119 = sbr.rel (0) target = $region21
    $region20: #{tpu_custom_call.1} parent=1 // pred_region
      %120 = dma.done [#allocation4], 256
    $region21: #{tpu_custom_call.1} parent=1 // pred_fallthru
      _
    // Predicated region
    $region22: #{tpu_custom_call.1} parent=1 // pred_check
      _
    $region23: #{tpu_custom_call.1} parent=1 // pred_check_branch
      %122 = sbr.rel (0) target = $region25
    $region24: #{tpu_custom_call.1} parent=1 // pred_region
      %123 = dma.done [#allocation7], 256
    $region25: #{tpu_custom_call.1} parent=1 // pred_fallthru
      _
    %124 = vsyncpa [#allocation3], 1
    %125 = vsyncpa [#allocation4], 1
    %126 = vsyncpa [#allocation7], 1

</llo_original>
